<compile_context>
chip_gen: v6e
topology: v6e:2x2x1
jax: 0.10.0
libtpu: 0.0.40
codegen_flags: <defaults>
</compile_context>

<pallas_src>
import functools

import jax
import jax.numpy as jnp
from jax.experimental import pallas as pl
from jax.experimental.pallas import tpu as pltpu

nINF = -100.0


def _two_way_loss_kernel(x_ref, y_ref, out_ref, lp_ref, ln_ref, cm_ref, smp_ref,
                         *, inv_Tp, inv_Tn, Tp, Tn):
    step = pl.program_id(0)

    @pl.when(step == 0)
    def _init():
        # Running class-axis logsumexp accumulators (1, C) + class mask.
        lp_ref[...] = jnp.full_like(lp_ref, -jnp.inf)
        ln_ref[...] = jnp.full_like(ln_ref, -jnp.inf)
        cm_ref[...] = jnp.zeros_like(cm_ref)
        smp_ref[0] = jnp.float32(0.0)   # sum of selected per-sample softplus terms
        smp_ref[1] = jnp.float32(0.0)   # number of selected samples

    # Labels arrive in their narrow storage dtype (e.g. int8); the widen below is
    # an in-register VPU convert (no extra HBM traffic — the point of the narrow
    # boundary dtype is bandwidth, which is preserved).
    yi = y_ref[...].astype(jnp.int32)                         # (T, C)
    posf = (yi > 0).astype(jnp.float32)                       # 1.0 where y > 0
    zerf = (yi == 0).astype(jnp.float32)                      # 1.0 where y == 0
    pmask = posf * (-nINF) + nINF                             # 0 where y>0 else -100
    nmask = zerf * (-nINF) + nINF                             # 0 where y==0 else -100

    xf = x_ref[...].astype(jnp.float32)                       # promote inside arithmetic
    pz = xf * (-inv_Tp) + pmask                               # -x/Tp + pmask
    nz = xf * inv_Tn + nmask                                  #  x/Tn + nmask

    C = pz.shape[1]
    ones_c = jnp.ones((C, 1), jnp.float32)                    # MXU lane-sum helper

    def shared_lse(z):
        # One scalar reference max per tile: a single exp pass serves both the
        # class-axis (sublane) and sample-axis (lane, via MXU) reductions.
        m = jnp.max(z)                                        # scalar
        e = jnp.exp(z - m)                                    # (T, C), single EUP pass
        col = m + jnp.log(jnp.sum(e, axis=0, keepdims=True))                       # (1, C)
        row = m + jnp.log(jnp.dot(e, ones_c, preferred_element_type=jnp.float32))  # (T, 1)
        return col, row

    pcol, prow = shared_lse(pz)
    ncol, nrow = shared_lse(nz)

    # --- class-axis term: online logsumexp + OR-accumulated class mask ---------
    lp_ref[...] = jnp.logaddexp(lp_ref[...], pcol)
    ln_ref[...] = jnp.logaddexp(ln_ref[...], ncol)
    cm_ref[...] = jnp.maximum(cm_ref[...], jnp.max(posf, axis=0, keepdims=True))

    # --- per-sample term: every row is complete within this tile ---------------
    smp_vals = jnp.logaddexp(0.0, nrow * Tn + prow * Tp)      # softplus, (T, 1)
    row_cnt = jnp.dot(posf, ones_c, preferred_element_type=jnp.float32)   # (T, 1) MXU count
    rm = (row_cnt > 0.5).astype(jnp.float32)                  # sample_mask (padded rows -> 0)
    smp_ref[0] = smp_ref[0] + jnp.sum(smp_vals * rm)
    smp_ref[1] = smp_ref[1] + jnp.sum(rm)

    @pl.when(step == pl.num_programs(0) - 1)
    def _finalize():
        # softplus(nlogit_class + plogit_class), masked mean over selected classes.
        cls_vals = jnp.logaddexp(0.0, ln_ref[...] * Tn + lp_ref[...] * Tp)   # (1, C)
        cm = cm_ref[...]
        # NOTE: matches the reference's mean-of-empty behavior (NaN) when there
        # is no positive label anywhere.
        cls_mean = jnp.sum(cls_vals * cm) / jnp.sum(cm)
        out_ref[0, 0] = cls_mean + smp_ref[0] / smp_ref[1]


def _round_up(v, m):
    return ((v + m - 1) // m) * m


def two_way_loss(x, y, Tp=4.0, Tn=1.0, tile_n=None):
    """Two-way multi-label loss.

    x: (N, C) logits (float32 or bfloat16).
    y: (N, C) labels (>0 positive, ==0 negative, <0 ignored), any int/float dtype
       (int8 recommended to minimize HBM traffic).
    Returns a float32 scalar. NaN if no positive label exists anywhere (same as
    the PyTorch reference's mean over an empty selection).
    """
    N, C = x.shape
    assert y.shape == (N, C), (x.shape, y.shape)

    # Lane-dense layout: pad classes to a multiple of 128. Padded labels are -1
    # ("ignored"), so padded columns drop out of both masks and the class mean;
    # padded rows have no positives and drop out of the sample mean.
    C_pad = _round_up(max(C, 128), 128)

    if tile_n is None:
        # Conservative VMEM budget: 2 double-buffered input tiles plus ~5 f32
        # tile-sized temporaries under ~24 MiB (fits v7x's 64 MiB VMEM too).
        bx = jnp.dtype(x.dtype).itemsize
        by = jnp.dtype(y.dtype).itemsize
        budget = 24 * 1024 * 1024
        per_row = C_pad * (2 * (bx + by) + 5 * 4)
        tile_n = max(32, min(512, (budget // per_row) // 32 * 32))
    tile_n = min(int(tile_n), _round_up(N, 32))   # don't blow up tiny batches
    N_pad = _round_up(N, tile_n)

    if (N_pad, C_pad) != (N, C):
        x = jnp.pad(x, ((0, N_pad - N), (0, C_pad - C)))
        y = jnp.pad(y, ((0, N_pad - N), (0, C_pad - C)), constant_values=-1)

    kernel = functools.partial(
        _two_way_loss_kernel,
        inv_Tp=1.0 / float(Tp), inv_Tn=1.0 / float(Tn),
        Tp=float(Tp), Tn=float(Tn))

    out = pl.pallas_call(
        kernel,
        out_shape=jax.ShapeDtypeStruct((1, 1), jnp.float32),
        grid=(N_pad // tile_n,),
        in_specs=[
            pl.BlockSpec((tile_n, C_pad), lambda i: (i, 0)),
            pl.BlockSpec((tile_n, C_pad), lambda i: (i, 0)),
        ],
        out_specs=pl.BlockSpec((1, 1), lambda i: (0, 0), memory_space=pltpu.SMEM),
        scratch_shapes=[
            pltpu.VMEM((1, C_pad), jnp.float32),   # running class LSE of -x/Tp + pmask
            pltpu.VMEM((1, C_pad), jnp.float32),   # running class LSE of  x/Tn + nmask
            pltpu.VMEM((1, C_pad), jnp.float32),   # OR-accumulated class mask
            pltpu.SMEM((2,), jnp.float32),         # per-sample softplus sum / count
        ],
        compiler_params=pltpu.CompilerParams(
            # Sequential reduction over N-tiles with carried accumulators.
            # TODO(synk): shard the N grid across the 2 TensorCores on v7x
            # (core-parallel leading axis / core_map) with per-core partials.
            dimension_semantics=("arbitrary",),
            vmem_limit_bytes=48 * 1024 * 1024,
        ),
    )(x, y)
    return out[0, 0]


def _two_way_loss_ref(x, y, Tp=4.0, Tn=1.0):
    """Pure-JAX mirror of the PyTorch module (for a sanity check)."""
    x = x.astype(jnp.float32)
    y = y.astype(jnp.float32)
    class_mask = (y > 0).any(axis=0)
    sample_mask = (y > 0).any(axis=1)
    pmask = jnp.where(y > 0, 0.0, nINF)
    nmask = jnp.where(y == 0, 0.0, nINF)
    plogit_class = jax.nn.logsumexp(-x / Tp + pmask, axis=0) * Tp
    plogit_sample = jax.nn.logsumexp(-x / Tp + pmask, axis=1) * Tp
    nlogit_class = jax.nn.logsumexp(x / Tn + nmask, axis=0) * Tn
    nlogit_sample = jax.nn.logsumexp(x / Tn + nmask, axis=1) * Tn
    cls = jax.nn.softplus(nlogit_class + plogit_class)
    smp = jax.nn.softplus(nlogit_sample + plogit_sample)
    cls_mean = jnp.sum(jnp.where(class_mask, cls, 0.0)) / jnp.sum(class_mask)
    smp_mean = jnp.sum(jnp.where(sample_mask, smp, 0.0)) / jnp.sum(sample_mask)
    return cls_mean + smp_mean


if __name__ == "__main__":
    key = jax.random.PRNGKey(0)
    kx, ky, kx2, ky2 = jax.random.split(key, 4)

    # ---- small demo consistent with the module: batch=8, classes=32 ----------
    N, C = 8, 32
    x = jax.random.normal(kx, (N, C), dtype=jnp.float32).astype(jnp.bfloat16)
    # labels in {-1, 0, 1}: 1 = positive, 0 = negative, -1 = ignored
    y = jax.random.randint(ky, (N, C), -1, 2).astype(jnp.int8)
    y = y.at[0, 0].set(1)   # guarantee at least one positive (else loss is NaN by spec)

    loss = two_way_loss(x, y, Tp=4.0, Tn=1.0)
    jax.block_until_ready(loss)
    ref = _two_way_loss_ref(x, y, Tp=4.0, Tn=1.0)
    assert bool(jnp.isfinite(loss)), loss
    assert abs(float(loss) - float(ref)) <= 2e-3 * max(1.0, abs(float(ref))), (loss, ref)

    # ---- multi-tile case to exercise the online class-LSE accumulation -------
    N2, C2 = 80, 200
    x2 = jax.random.normal(kx2, (N2, C2), dtype=jnp.float32).astype(jnp.bfloat16)
    y2 = jax.random.randint(ky2, (N2, C2), -1, 2).astype(jnp.int8)
    y2 = y2.at[0, 0].set(1)
    loss2 = two_way_loss(x2, y2, Tp=4.0, Tn=1.0, tile_n=32)   # 3 grid steps
    jax.block_until_ready(loss2)
    ref2 = _two_way_loss_ref(x2, y2, Tp=4.0, Tn=1.0)
    assert abs(float(loss2) - float(ref2)) <= 2e-3 * max(1.0, abs(float(ref2))), (loss2, ref2)

    print("KERNEL_OK")
</pallas_src>

<mosaic_0001>
module attributes {stable_mosaic.version = 11 : i64} {
  func.func @_two_way_loss_kernel(%arg0: i32, %arg1: memref<32x128xbf16, #tpu.memory_space<vmem>>, %arg2: memref<32x128xi8, #tpu.memory_space<vmem>>, %arg3: memref<1x1xf32, #tpu.memory_space<smem>>, %arg4: memref<1x128xf32, #tpu.memory_space<vmem>>, %arg5: memref<1x128xf32, #tpu.memory_space<vmem>>, %arg6: memref<1x128xf32, #tpu.memory_space<vmem>>, %arg7: memref<2xf32, #tpu.memory_space<smem>>) attributes {dimension_semantics = [#tpu.dimension_semantics<arbitrary>], iteration_bounds = array<i64: 1>, scalar_prefetch = 0 : i64, scratch_operands = 4 : i64, tpu.core_type = #tpu.core_type<tc>, window_params = [{transform_indices = @transform_0, window_bounds = array<i64: 32, 128>}, {transform_indices = @transform_1, window_bounds = array<i64: 32, 128>}, {transform_indices = @transform_2, window_bounds = array<i64: 1, 1>}]} {
    %c0_i32 = arith.constant 0 : i32
    %0 = arith.cmpi eq, %arg0, %c0_i32 : i32
    %1 = arith.extui %0 : i1 to i32
    %c0_i32_0 = arith.constant 0 : i32
    %2 = arith.cmpi ne, %1, %c0_i32_0 : i32
    scf.if %2 {
      %cst_46 = arith.constant 0xFF800000 : f32
      %135 = vector.broadcast %cst_46 : f32 to vector<1x128xf32>
      %c0_47 = arith.constant 0 : index
      %c0_48 = arith.constant 0 : index
      %136 = vector.load %arg4[%c0_47, %c0_48] : memref<1x128xf32, #tpu.memory_space<vmem>>, vector<1x128xf32>
      tpu.vector_store %arg4[%c0_47, %c0_48], %135 {strides = array<i32>} : memref<1x128xf32, #tpu.memory_space<vmem>>, vector<1x128xf32>,
      %cst_49 = arith.constant 0xFF800000 : f32
      %137 = vector.broadcast %cst_49 : f32 to vector<1x128xf32>
      %c0_50 = arith.constant 0 : index
      %c0_51 = arith.constant 0 : index
      %138 = vector.load %arg5[%c0_50, %c0_51] : memref<1x128xf32, #tpu.memory_space<vmem>>, vector<1x128xf32>
      tpu.vector_store %arg5[%c0_50, %c0_51], %137 {strides = array<i32>} : memref<1x128xf32, #tpu.memory_space<vmem>>, vector<1x128xf32>,
      %cst_52 = arith.constant 0.000000e+00 : f32
      %139 = vector.broadcast %cst_52 : f32 to vector<1x128xf32>
      %c0_53 = arith.constant 0 : index
      %c0_54 = arith.constant 0 : index
      %140 = vector.load %arg6[%c0_53, %c0_54] : memref<1x128xf32, #tpu.memory_space<vmem>>, vector<1x128xf32>
      tpu.vector_store %arg6[%c0_53, %c0_54], %139 {strides = array<i32>} : memref<1x128xf32, #tpu.memory_space<vmem>>, vector<1x128xf32>,
      %cst_55 = arith.constant 0.000000e+00 : f32
      %c0_56 = arith.constant 0 : index
      %141 = memref.load %arg7[%c0_56] : memref<2xf32, #tpu.memory_space<smem>>
      memref.store %cst_55, %arg7[%c0_56] : memref<2xf32, #tpu.memory_space<smem>>
      %cst_57 = arith.constant 0.000000e+00 : f32
      %c1_58 = arith.constant 1 : index
      %142 = memref.load %arg7[%c1_58] : memref<2xf32, #tpu.memory_space<smem>>
      memref.store %cst_57, %arg7[%c1_58] : memref<2xf32, #tpu.memory_space<smem>>
    } else {
    }
    %c0 = arith.constant 0 : index
    %c0_1 = arith.constant 0 : index
    %3 = vector.load %arg2[%c0, %c0_1] : memref<32x128xi8, #tpu.memory_space<vmem>>, vector<32x128xi8>
    %4 = arith.extsi %3 : vector<32x128xi8> to vector<32x128xi32>
    %c0_i32_2 = arith.constant 0 : i32
    %5 = vector.broadcast %c0_i32_2 : i32 to vector<32x128xi32>
    %6 = arith.cmpi sgt, %4, %5 : vector<32x128xi32>
    %7 = arith.extui %6 : vector<32x128xi1> to vector<32x128xi32>
    %8 = arith.sitofp %7 : vector<32x128xi32> to vector<32x128xf32>
    %c0_i32_3 = arith.constant 0 : i32
    %9 = vector.broadcast %c0_i32_3 : i32 to vector<32x128xi32>
    %10 = arith.cmpi eq, %4, %9 : vector<32x128xi32>
    %11 = arith.extui %10 : vector<32x128xi1> to vector<32x128xi32>
    %12 = arith.sitofp %11 : vector<32x128xi32> to vector<32x128xf32>
    %cst = arith.constant 1.000000e+02 : f32
    %13 = vector.broadcast %cst : f32 to vector<32x128xf32>
    %14 = arith.mulf %8, %13 : vector<32x128xf32>
    %cst_4 = arith.constant -1.000000e+02 : f32
    %15 = vector.broadcast %cst_4 : f32 to vector<32x128xf32>
    %16 = arith.addf %14, %15 : vector<32x128xf32>
    %cst_5 = arith.constant 1.000000e+02 : f32
    %17 = vector.broadcast %cst_5 : f32 to vector<32x128xf32>
    %18 = arith.mulf %12, %17 : vector<32x128xf32>
    %cst_6 = arith.constant -1.000000e+02 : f32
    %19 = vector.broadcast %cst_6 : f32 to vector<32x128xf32>
    %20 = arith.addf %18, %19 : vector<32x128xf32>
    %c0_7 = arith.constant 0 : index
    %c0_8 = arith.constant 0 : index
    %21 = vector.load %arg1[%c0_7, %c0_8] : memref<32x128xbf16, #tpu.memory_space<vmem>>, vector<32x128xbf16>
    %22 = arith.extf %21 : vector<32x128xbf16> to vector<32x128xf32>
    %cst_9 = arith.constant -2.500000e-01 : f32
    %23 = vector.broadcast %cst_9 : f32 to vector<32x128xf32>
    %24 = arith.mulf %22, %23 : vector<32x128xf32>
    %25 = arith.addf %24, %16 : vector<32x128xf32>
    %cst_10 = arith.constant 1.000000e+00 : f32
    %26 = vector.broadcast %cst_10 : f32 to vector<32x128xf32>
    %27 = arith.mulf %22, %26 : vector<32x128xf32>
    %28 = arith.addf %27, %20 : vector<32x128xf32>
    %cst_11 = arith.constant 1.000000e+00 : f32
    %29 = vector.broadcast %cst_11 : f32 to vector<128x1xf32>
    %30 = vector.shape_cast %25 : vector<32x128xf32> to vector<1x32x128xf32>
    %cst_12 = arith.constant dense<0xFF800000> : vector<1xf32>
    %31 = vector.multi_reduction <maximumf>, %30, %cst_12 [1, 2] : vector<1x32x128xf32> to vector<1xf32>
    %32 = vector.shape_cast %31 : vector<1xf32> to vector<1x1x1xf32>
    %33 = vector.extract %32[0, 0, 0] : f32 from vector<1x1x1xf32>
    %34 = vector.broadcast %33 : f32 to vector<32x128xf32>
    %35 = arith.subf %25, %34 : vector<32x128xf32>
    %36 = math.exp %35 : vector<32x128xf32>
    %cst_13 = arith.constant dense<0.000000e+00> : vector<128xf32>
    %37 = vector.multi_reduction <add>, %36, %cst_13 [0] : vector<32x128xf32> to vector<128xf32>
    %38 = vector.shape_cast %37 : vector<128xf32> to vector<1x128xf32>
    %39 = math.log %38 : vector<1x128xf32>
    %40 = vector.broadcast %33 : f32 to vector<1x128xf32>
    %41 = arith.addf %40, %39 : vector<1x128xf32>
    %cst_14 = arith.constant dense<0.000000e+00> : vector<32x1xf32>
    %42 = tpu.matmul %36, %29, %cst_14 {dimension_numbers = #tpu.dot_dimension_numbers<[1], [0], [0], [1], [0, 0, 1, 1], [], []>} : vector<32x128xf32>, vector<128x1xf32>, vector<32x1xf32> -> vector<32x1xf32>
    %43 = math.log %42 : vector<32x1xf32>
    %44 = vector.broadcast %33 : f32 to vector<32x1xf32>
    %45 = arith.addf %44, %43 : vector<32x1xf32>
    %46 = vector.shape_cast %28 : vector<32x128xf32> to vector<1x32x128xf32>
    %cst_15 = arith.constant dense<0xFF800000> : vector<1xf32>
    %47 = vector.multi_reduction <maximumf>, %46, %cst_15 [1, 2] : vector<1x32x128xf32> to vector<1xf32>
    %48 = vector.shape_cast %47 : vector<1xf32> to vector<1x1x1xf32>
    %49 = vector.extract %48[0, 0, 0] : f32 from vector<1x1x1xf32>
    %50 = vector.broadcast %49 : f32 to vector<32x128xf32>
    %51 = arith.subf %28, %50 : vector<32x128xf32>
    %52 = math.exp %51 : vector<32x128xf32>
    %cst_16 = arith.constant dense<0.000000e+00> : vector<128xf32>
    %53 = vector.multi_reduction <add>, %52, %cst_16 [0] : vector<32x128xf32> to vector<128xf32>
    %54 = vector.shape_cast %53 : vector<128xf32> to vector<1x128xf32>
    %55 = math.log %54 : vector<1x128xf32>
    %56 = vector.broadcast %49 : f32 to vector<1x128xf32>
    %57 = arith.addf %56, %55 : vector<1x128xf32>
    %cst_17 = arith.constant dense<0.000000e+00> : vector<32x1xf32>
    %58 = tpu.matmul %52, %29, %cst_17 {dimension_numbers = #tpu.dot_dimension_numbers<[1], [0], [0], [1], [0, 0, 1, 1], [], []>} : vector<32x128xf32>, vector<128x1xf32>, vector<32x1xf32> -> vector<32x1xf32>
    %59 = math.log %58 : vector<32x1xf32>
    %60 = vector.broadcast %49 : f32 to vector<32x1xf32>
    %61 = arith.addf %60, %59 : vector<32x1xf32>
    %c0_18 = arith.constant 0 : index
    %c0_19 = arith.constant 0 : index
    %62 = vector.load %arg4[%c0_18, %c0_19] : memref<1x128xf32, #tpu.memory_space<vmem>>, vector<1x128xf32>
    %63 = arith.maximumf %62, %41 : vector<1x128xf32>
    %64 = arith.subf %62, %41 : vector<1x128xf32>
    %65 = arith.cmpf one, %64, %64 : vector<1x128xf32>
    %66 = arith.addf %62, %41 : vector<1x128xf32>
    %67 = math.absf %64 : vector<1x128xf32>
    %cst_20 = arith.constant 0.000000e+00 : f32
    %68 = vector.broadcast %cst_20 : f32 to vector<1x128xf32>
    %69 = arith.subf %68, %67 : vector<1x128xf32>
    %70 = math.exp %69 : vector<1x128xf32>
    %71 = math.log1p %70 : vector<1x128xf32>
    %72 = arith.addf %63, %71 : vector<1x128xf32>
    %73 = arith.select %65, %66, %72 : vector<1x128xi1>, vector<1x128xf32>
    %c0_21 = arith.constant 0 : index
    %c0_22 = arith.constant 0 : index
    %74 = vector.load %arg4[%c0_21, %c0_22] : memref<1x128xf32, #tpu.memory_space<vmem>>, vector<1x128xf32>
    tpu.vector_store %arg4[%c0_21, %c0_22], %73 {strides = array<i32>} : memref<1x128xf32, #tpu.memory_space<vmem>>, vector<1x128xf32>,
    %c0_23 = arith.constant 0 : index
    %c0_24 = arith.constant 0 : index
    %75 = vector.load %arg5[%c0_23, %c0_24] : memref<1x128xf32, #tpu.memory_space<vmem>>, vector<1x128xf32>
    %76 = arith.maximumf %75, %57 : vector<1x128xf32>
    %77 = arith.subf %75, %57 : vector<1x128xf32>
    %78 = arith.cmpf one, %77, %77 : vector<1x128xf32>
    %79 = arith.addf %75, %57 : vector<1x128xf32>
    %80 = math.absf %77 : vector<1x128xf32>
    %cst_25 = arith.constant 0.000000e+00 : f32
    %81 = vector.broadcast %cst_25 : f32 to vector<1x128xf32>
    %82 = arith.subf %81, %80 : vector<1x128xf32>
    %83 = math.exp %82 : vector<1x128xf32>
    %84 = math.log1p %83 : vector<1x128xf32>
    %85 = arith.addf %76, %84 : vector<1x128xf32>
    %86 = arith.select %78, %79, %85 : vector<1x128xi1>, vector<1x128xf32>
    %c0_26 = arith.constant 0 : index
    %c0_27 = arith.constant 0 : index
    %87 = vector.load %arg5[%c0_26, %c0_27] : memref<1x128xf32, #tpu.memory_space<vmem>>, vector<1x128xf32>
    tpu.vector_store %arg5[%c0_26, %c0_27], %86 {strides = array<i32>} : memref<1x128xf32, #tpu.memory_space<vmem>>, vector<1x128xf32>,
    %c0_28 = arith.constant 0 : index
    %c0_29 = arith.constant 0 : index
    %88 = vector.load %arg6[%c0_28, %c0_29] : memref<1x128xf32, #tpu.memory_space<vmem>>, vector<1x128xf32>
    %cst_30 = arith.constant dense<0xFF800000> : vector<128xf32>
    %89 = vector.multi_reduction <maximumf>, %8, %cst_30 [0] : vector<32x128xf32> to vector<128xf32>
    %90 = vector.shape_cast %89 : vector<128xf32> to vector<1x128xf32>
    %91 = arith.maximumf %88, %90 : vector<1x128xf32>
    %c0_31 = arith.constant 0 : index
    %c0_32 = arith.constant 0 : index
    %92 = vector.load %arg6[%c0_31, %c0_32] : memref<1x128xf32, #tpu.memory_space<vmem>>, vector<1x128xf32>
    tpu.vector_store %arg6[%c0_31, %c0_32], %91 {strides = array<i32>} : memref<1x128xf32, #tpu.memory_space<vmem>>, vector<1x128xf32>,
    %cst_33 = arith.constant 1.000000e+00 : f32
    %93 = vector.broadcast %cst_33 : f32 to vector<32x1xf32>
    %94 = arith.mulf %61, %93 : vector<32x1xf32>
    %cst_34 = arith.constant 4.000000e+00 : f32
    %95 = vector.broadcast %cst_34 : f32 to vector<32x1xf32>
    %96 = arith.mulf %45, %95 : vector<32x1xf32>
    %97 = arith.addf %94, %96 : vector<32x1xf32>
    %cst_35 = arith.constant 0.000000e+00 : f32
    %98 = vector.broadcast %cst_35 : f32 to vector<32x1xf32>
    %99 = arith.maximumf %98, %97 : vector<32x1xf32>
    %100 = vector.broadcast %cst_35 : f32 to vector<32x1xf32>
    %101 = arith.subf %100, %97 : vector<32x1xf32>
    %102 = arith.cmpf one, %101, %101 : vector<32x1xf32>
    %103 = vector.broadcast %cst_35 : f32 to vector<32x1xf32>
    %104 = arith.addf %103, %97 : vector<32x1xf32>
    %105 = math.absf %101 : vector<32x1xf32>
    %cst_36 = arith.constant 0.000000e+00 : f32
    %106 = vector.broadcast %cst_36 : f32 to vector<32x1xf32>
    %107 = arith.subf %106, %105 : vector<32x1xf32>
    %108 = math.exp %107 : vector<32x1xf32>
    %109 = math.log1p %108 : vector<32x1xf32>
    %110 = arith.addf %99, %109 : vector<32x1xf32>
    %111 = arith.select %102, %104, %110 : vector<32x1xi1>, vector<32x1xf32>
    %cst_37 = arith.constant dense<0.000000e+00> : vector<32x1xf32>
    %112 = tpu.matmul %8, %29, %cst_37 {dimension_numbers = #tpu.dot_dimension_numbers<[1], [0], [0], [1], [0, 0, 1, 1], [], []>} : vector<32x128xf32>, vector<128x1xf32>, vector<32x1xf32> -> vector<32x1xf32>
    %cst_38 = arith.constant 5.000000e-01 : f32
    %113 = vector.broadcast %cst_38 : f32 to vector<32x1xf32>
    %114 = arith.cmpf ogt, %112, %113 : vector<32x1xf32>
    %115 = arith.extui %114 : vector<32x1xi1> to vector<32x1xi32>
    %116 = arith.sitofp %115 : vector<32x1xi32> to vector<32x1xf32>
    %c0_39 = arith.constant 0 : index
    %117 = memref.load %arg7[%c0_39] : memref<2xf32, #tpu.memory_space<smem>>
    %118 = arith.mulf %111, %116 : vector<32x1xf32>
    %119 = vector.shape_cast %118 : vector<32x1xf32> to vector<1x32x1xf32>
    %cst_40 = arith.constant dense<0.000000e+00> : vector<1xf32>
    %120 = vector.multi_reduction <add>, %119, %cst_40 [1, 2] : vector<1x32x1xf32> to vector<1xf32>
    %121 = vector.shape_cast %120 : vector<1xf32> to vector<1x1x1xf32>
    %122 = vector.extract %121[0, 0, 0] : f32 from vector<1x1x1xf32>
    %123 = arith.addf %117, %122 : f32
    %c0_41 = arith.constant 0 : index
    %124 = memref.load %arg7[%c0_41] : memref<2xf32, #tpu.memory_space<smem>>
    memref.store %123, %arg7[%c0_41] : memref<2xf32, #tpu.memory_space<smem>>
    %c1 = arith.constant 1 : index
    %125 = memref.load %arg7[%c1] : memref<2xf32, #tpu.memory_space<smem>>
    %126 = vector.shape_cast %116 : vector<32x1xf32> to vector<1x32x1xf32>
    %cst_42 = arith.constant dense<0.000000e+00> : vector<1xf32>
    %127 = vector.multi_reduction <add>, %126, %cst_42 [1, 2] : vector<1x32x1xf32> to vector<1xf32>
    %128 = vector.shape_cast %127 : vector<1xf32> to vector<1x1x1xf32>
    %129 = vector.extract %128[0, 0, 0] : f32 from vector<1x1x1xf32>
    %130 = arith.addf %125, %129 : f32
    %c1_43 = arith.constant 1 : index
    %131 = memref.load %arg7[%c1_43] : memref<2xf32, #tpu.memory_space<smem>>
    memref.store %130, %arg7[%c1_43] : memref<2xf32, #tpu.memory_space<smem>>
    %c0_i32_44 = arith.constant 0 : i32
    %132 = arith.cmpi eq, %arg0, %c0_i32_44 : i32
    %133 = arith.extui %132 : i1 to i32
    %c0_i32_45 = arith.constant 0 : i32
    %134 = arith.cmpi ne, %133, %c0_i32_45 : i32
    scf.if %134 {
      %c0_46 = arith.constant 0 : index
      %c0_47 = arith.constant 0 : index
      %135 = vector.load %arg5[%c0_46, %c0_47] : memref<1x128xf32, #tpu.memory_space<vmem>>, vector<1x128xf32>
      %cst_48 = arith.constant 1.000000e+00 : f32
      %136 = vector.broadcast %cst_48 : f32 to vector<1x128xf32>
      %137 = arith.mulf %135, %136 : vector<1x128xf32>
      %c0_49 = arith.constant 0 : index
      %c0_50 = arith.constant 0 : index
      %138 = vector.load %arg4[%c0_49, %c0_50] : memref<1x128xf32, #tpu.memory_space<vmem>>, vector<1x128xf32>
      %cst_51 = arith.constant 4.000000e+00 : f32
      %139 = vector.broadcast %cst_51 : f32 to vector<1x128xf32>
      %140 = arith.mulf %138, %139 : vector<1x128xf32>
      %141 = arith.addf %137, %140 : vector<1x128xf32>
      %cst_52 = arith.constant 0.000000e+00 : f32
      %142 = vector.broadcast %cst_52 : f32 to vector<1x128xf32>
      %143 = arith.maximumf %142, %141 : vector<1x128xf32>
      %144 = vector.broadcast %cst_52 : f32 to vector<1x128xf32>
      %145 = arith.subf %144, %141 : vector<1x128xf32>
      %146 = arith.cmpf one, %145, %145 : vector<1x128xf32>
      %147 = vector.broadcast %cst_52 : f32 to vector<1x128xf32>
      %148 = arith.addf %147, %141 : vector<1x128xf32>
      %149 = math.absf %145 : vector<1x128xf32>
      %cst_53 = arith.constant 0.000000e+00 : f32
      %150 = vector.broadcast %cst_53 : f32 to vector<1x128xf32>
      %151 = arith.subf %150, %149 : vector<1x128xf32>
      %152 = math.exp %151 : vector<1x128xf32>
      %153 = math.log1p %152 : vector<1x128xf32>
      %154 = arith.addf %143, %153 : vector<1x128xf32>
      %155 = arith.select %146, %148, %154 : vector<1x128xi1>, vector<1x128xf32>
      %c0_54 = arith.constant 0 : index
      %c0_55 = arith.constant 0 : index
      %156 = vector.load %arg6[%c0_54, %c0_55] : memref<1x128xf32, #tpu.memory_space<vmem>>, vector<1x128xf32>
      %157 = arith.mulf %155, %156 : vector<1x128xf32>
      %158 = vector.shape_cast %157 : vector<1x128xf32> to vector<1x1x128xf32>
      %cst_56 = arith.constant dense<0.000000e+00> : vector<1xf32>
      %159 = vector.multi_reduction <add>, %158, %cst_56 [1, 2] : vector<1x1x128xf32> to vector<1xf32>
      %160 = vector.shape_cast %159 : vector<1xf32> to vector<1x1x1xf32>
      %161 = vector.extract %160[0, 0, 0] : f32 from vector<1x1x1xf32>
      %162 = vector.shape_cast %156 : vector<1x128xf32> to vector<1x1x128xf32>
      %cst_57 = arith.constant dense<0.000000e+00> : vector<1xf32>
      %163 = vector.multi_reduction <add>, %162, %cst_57 [1, 2] : vector<1x1x128xf32> to vector<1xf32>
      %164 = vector.shape_cast %163 : vector<1xf32> to vector<1x1x1xf32>
      %165 = vector.extract %164[0, 0, 0] : f32 from vector<1x1x1xf32>
      %166 = arith.divf %161, %165 : f32
      %c0_58 = arith.constant 0 : index
      %167 = memref.load %arg7[%c0_58] : memref<2xf32, #tpu.memory_space<smem>>
      %c1_59 = arith.constant 1 : index
      %168 = memref.load %arg7[%c1_59] : memref<2xf32, #tpu.memory_space<smem>>
      %169 = arith.divf %167, %168 : f32
      %170 = arith.addf %166, %169 : f32
      %c0_60 = arith.constant 0 : index
      %c0_61 = arith.constant 0 : index
      %171 = memref.load %arg3[%c0_60, %c0_61] : memref<1x1xf32, #tpu.memory_space<smem>>
      memref.store %170, %arg3[%c0_60, %c0_61] : memref<1x1xf32, #tpu.memory_space<smem>>
    } else {
    }
    return
  }
  func.func @transform_0(%arg0: i32) -> (i32, i32) {
    %c0_i32 = arith.constant 0 : i32
    %c0_i32_0 = arith.constant 0 : i32
    return %arg0, %c0_i32 : i32, i32
  }
  func.func @transform_1(%arg0: i32) -> (i32, i32) {
    %c0_i32 = arith.constant 0 : i32
    %c0_i32_0 = arith.constant 0 : i32
    return %arg0, %c0_i32 : i32, i32
  }
  func.func @transform_2(%arg0: i32) -> (i32, i32) {
    %c0_i32 = arith.constant 0 : i32
    %c0_i32_0 = arith.constant 0 : i32
    %c0_i32_1 = arith.constant 0 : i32
    return %c0_i32, %c0_i32_0 : i32, i32
  }
}

</mosaic_0001>

<llo_original>
// kernel: tpu_custom_call.1
$region0: #{tpu_custom_call.1}
  #allocation0 [shape = 'u32[]', space=smem, size = 0x4, offset = 0x4, fixed_abs, tag = 'smem constant byte address 0x4 - core index']
  #allocation1 [shape = 'u32[144,128]{1,0:T(1,128)}', space=vmem, size = 0x12000, scoped, tag = 'internal scratch']
  #allocation2 [shape = 'f32[1,128]{1,0:T(1,128)}', space=vmem, size = 0x200, scoped, tag = 'scratch operand']
  #allocation3 [shape = 'f32[1,128]{1,0:T(1,128)}', space=vmem, size = 0x200, scoped, tag = 'scratch operand']
  #allocation4 [shape = 'f32[1,128]{1,0:T(1,128)}', space=vmem, size = 0x200, scoped, tag = 'scratch operand']
  #allocation5 [shape = 'f32[2]{0:T(128)}', space=smem, size = 0x200, scoped, tag = 'scratch operand']
  %s0 = inlined_call_operand.hbm [shape: bf16[32,128], index: 0, kind: input, shape index: {}]
  %s1 = inlined_call_operand.hbm [shape: s8[32,128], index: 1, kind: input, shape index: {}]
  %s2 = inlined_call_operand.hbm [shape: f32[1,1], index: 2, kind: output, shape index: {}]
  %s3 = sld [smem:[#allocation0]]
  $region34: #{tpu_custom_call.1} parent=0
    _
  %s5 = ssub.s32 1, %s3
  %s6 = scalar_select 0, %s5, %s3
  $region1: #{tpu_custom_call.1} parent=0
    #allocation6 [shape = 'u8[8192]{0}', space=vmem, size = 0x2000, scoped, tag = 'input window, operand 0, single buffered']
    #allocation7 [shape = 's32[1]{0}', space=sflag, size = 0x4, scoped, tag = 'scoped memory for tpu_custom_call.1']
    #allocation8 [shape = 's32[1]{0}', space=sflag, size = 0x4, scoped, tag = 'scoped memory for tpu_custom_call.1']
    #allocation9 [shape = 'u8[4096]{0}', space=vmem, size = 0x1000, scoped, tag = 'input window, operand 1, single buffered']
    #allocation10 [shape = 's32[1]{0}', space=sflag, size = 0x4, scoped, tag = 'scoped memory for tpu_custom_call.1']
    #allocation11 [shape = 'u8[512]{0}', space=smem, size = 0x200, scoped, tag = 'output window, operand 0, single buffered']
    %7 = vsyncpa [#allocation7], 0
    %8 = vsyncpa [#allocation10], 0
    %9 = vsyncpa [#allocation8], 0
    // Predicated region
    $region2: #{tpu_custom_call.1} parent=1 // pred_check
      _
    $region3: #{tpu_custom_call.1} parent=1 // pred_check_branch
      %11 = sbr.rel (0) target = $region5
    $region4: #{tpu_custom_call.1} parent=1 // pred_region
      %s13 = ssub.s32 256, 256
      %14 = vsyncadd [#allocation7], %s13
      %s15 = sshll.u32 [#allocation6], 4
      %s16 = int_to_ptr.vmem [resolvable:$true] %s15
      %21 = dma.hbm_to_vmem [thread:$0]  %s0, 256, %s16, [#allocation7], 64, 64, 4
    $region5: #{tpu_custom_call.1} parent=1 // pred_fallthru
      _
    // Predicated region
    $region6: #{tpu_custom_call.1} parent=1 // pred_check
      _
    $region7: #{tpu_custom_call.1} parent=1 // pred_check_branch
      %23 = sbr.rel (0) target = $region9
    $region8: #{tpu_custom_call.1} parent=1 // pred_region
      %s25 = ssub.s32 128, 128
      %26 = vsyncadd [#allocation10], %s25
      %s28 = sshll.u32 [#allocation9], 4
      %s29 = int_to_ptr.vmem [resolvable:$true] %s28
      %31 = dma.hbm_to_vmem [thread:$0]  %s1, 128, %s29, [#allocation10]
    $region9: #{tpu_custom_call.1} parent=1 // pred_fallthru
      _
    // Predicated region
    $region10: #{tpu_custom_call.1} parent=1 // pred_check
      _
    $region11: #{tpu_custom_call.1} parent=1 // pred_check_branch
      %33 = sbr.rel (0) target = $region13
    $region12: #{tpu_custom_call.1} parent=1 // pred_region
      %34 = dma.done [#allocation7], 256
    $region13: #{tpu_custom_call.1} parent=1 // pred_fallthru
      _
    // Predicated region
    $region14: #{tpu_custom_call.1} parent=1 // pred_check
      _
    $region15: #{tpu_custom_call.1} parent=1 // pred_check_branch
      %36 = sbr.rel (0) target = $region17
    $region16: #{tpu_custom_call.1} parent=1 // pred_region
      %37 = dma.done [#allocation10], 128
    $region17: #{tpu_custom_call.1} parent=1 // pred_fallthru
      _
    %p38 = scmp.eq.s32.totalorder 0, 0
    // Predicated region
    $region18: #{tpu_custom_call.1} parent=1 // pred_check
      %p39 = pneg %p38
    $region19: #{tpu_custom_call.1} parent=1 // pred_check_branch
      %41 = sbr.rel (%p39) target = $region21
    $region20: #{tpu_custom_call.1} parent=1 // pred_region
      %42 = vst [vmem:[#allocation2] sm:$0x1] -inf
      %43 = vst [vmem:[#allocation3] sm:$0x1] -inf
      %44 = vst [vmem:[#allocation4] sm:$0x1] 0.0
      %s45 = scalar_lea.smem [#allocation5], 0
      %46 = sst [smem:[%s45]] 0.0
      %s47 = scalar_lea.smem [#allocation5], 1
      %48 = sst [smem:[%s47]] 0.0
    $region21: #{tpu_custom_call.1} parent=1 // pred_fallthru
      _
    %v49 = vld [vmem:[#allocation9] sm:$0xff]
    %v50 = vunpack.c.0.s8 %v49
    %v51 = vunpack.c.1.s8 %v49
    %v52 = vunpack.c.2.s8 %v49
    %v53 = vunpack.c.3.s8 %v49
    %vm54 = vcmp.gt.s32.totalorder %v50, 0
    %vm55 = vcmp.gt.s32.totalorder %v51, 0
    %vm56 = vcmp.gt.s32.totalorder %v52, 0
    %vm57 = vcmp.gt.s32.totalorder %v53, 0
    %v58 = vsel %vm54, 1, 0
    %v59 = vsel %vm55, 1, 0
    %v60 = vsel %vm56, 1, 0
    %v61 = vsel %vm57, 1, 0
    %v62 = vcvt.s32.f32 %v58
    %v63 = vcvt.s32.f32 %v59
    %v64 = vcvt.s32.f32 %v60
    %v65 = vcvt.s32.f32 %v61
    %vm66 = vcmp.eq.s32.totalorder %v50, 0
    %vm67 = vcmp.eq.s32.totalorder %v51, 0
    %vm68 = vcmp.eq.s32.totalorder %v52, 0
    %vm69 = vcmp.eq.s32.totalorder %v53, 0
    %v70 = vsel %vm66, 1, 0
    %v71 = vsel %vm67, 1, 0
    %v72 = vsel %vm68, 1, 0
    %v73 = vsel %vm69, 1, 0
    %v74 = vcvt.s32.f32 %v70
    %v75 = vcvt.s32.f32 %v71
    %v76 = vcvt.s32.f32 %v72
    %v77 = vcvt.s32.f32 %v73
    %v78 = vmul.f32 %v62, 100.0
    %v79 = vmul.f32 %v63, 100.0
    %v80 = vmul.f32 %v64, 100.0
    %v81 = vmul.f32 %v65, 100.0
    %v82 = vadd.f32 %v78, -100.0
    %v83 = vadd.f32 %v79, -100.0
    %v84 = vadd.f32 %v80, -100.0
    %v85 = vadd.f32 %v81, -100.0
    %v86 = vmul.f32 %v74, 100.0
    %v87 = vmul.f32 %v75, 100.0
    %v88 = vmul.f32 %v76, 100.0
    %v89 = vmul.f32 %v77, 100.0
    %v90 = vadd.f32 %v86, -100.0
    %v91 = vadd.f32 %v87, -100.0
    %v92 = vadd.f32 %v88, -100.0
    %v93 = vadd.f32 %v89, -100.0
    %v94 = vld [vmem:[#allocation6] sm:$0xf]
    %v95 = vld [vmem:[#allocation6 + $0x4] sm:$0xf]
    %v96 = vld [vmem:[#allocation6 + $0x8] sm:$0xf]
    %v97 = vld [vmem:[#allocation6 + $0xc] sm:$0xf]
    %v98 = vunpack.c.l.bf16 %v94
    %v99 = vunpack.c.l.bf16 %v95
    %v100 = vunpack.c.l.bf16 %v96
    %v101 = vunpack.c.l.bf16 %v97
    %v102 = vmul.f32 %v98, -0.25
    %v103 = vmul.f32 %v99, -0.25
    %v104 = vmul.f32 %v100, -0.25
    %v105 = vmul.f32 %v101, -0.25
    %v106 = vadd.f32 %v102, %v82
    %v107 = vadd.f32 %v103, %v83
    %v108 = vadd.f32 %v104, %v84
    %v109 = vadd.f32 %v105, %v85
    %v110 = vadd.f32 %v98, %v90
    %v111 = vadd.f32 %v99, %v91
    %v112 = vadd.f32 %v100, %v92
    %v113 = vadd.f32 %v101, %v93
    %v114 = vmax.f32 %v106, %v107
    %v115 = vmax.f32 %v108, %v109
    %v116 = vmax.f32 %v114, %v115
    %117 = vmax.xlane.f32.xlu0 %v116
    %v118 = vpop.xlane.xlu0 %117
    %v119 = vrot.slane %v118, 4
    %v120 = vmax.f32 %v118, %v119
    %v121 = vrot.slane %v120, 2
    %v122 = vmax.f32 %v120, %v121
    %v123 = vrot.slane %v122, 1
    %v124 = vmax.f32 %v122, %v123
    %s125 = vtos %v124
    %v126 = vstv %s125
    %v127 = vsub.f32 %v106, %v126
    %v128 = vsub.f32 %v107, %v126
    %v129 = vsub.f32 %v108, %v126
    %v130 = vsub.f32 %v109, %v126
    %v131 = vmul.f32 %v127, 1.442695
    %v132 = vpow.pop %v131
    %v133 = vmul.f32 %v128, 1.442695
    %v134 = vpow.pop %v133
    %v135 = vmul.f32 %v129, 1.442695
    %v136 = vpow.pop %v135
    %v137 = vmul.f32 %v130, 1.442695
    %v138 = vpow.pop %v137
    %v139 = vadd.f32 %v132, %v134
    %v140 = vadd.f32 %v139, %v136
    %v141 = vadd.f32 %v140, %v138
    %v142 = vrot.slane %v141, 4
    %v143 = vadd.f32 %v141, %v142
    %v144 = vrot.slane %v143, 2
    %v145 = vadd.f32 %v143, %v144
    %v146 = vrot.slane %v145, 1
    %v147 = vadd.f32 %v145, %v146
    %v148 = vlog2.pop %v147
    %v149 = vmul.f32 %v148, 0.6931472
    %v150 = vadd.f32 %v126, %v149
    %151 = vmatprep.subr.mxu0 0.0
    %152 = vmatpush1.msra.mxu0 1.0
    %153 = vmatprep.subr.mxu0 0.0
    %154 = vmatpush1.msra.mxu0 1.0
    %155 = vmatprep.subr.mxu0 0.0
    %156 = vmatpush1.msra.mxu0 1.0
    %157 = vmatprep.subr.mxu0 0.0
    %158 = vmatpush1.msra.mxu0 1.0
    %159 = vmatprep.subr.mxu0 0.0
    %160 = vmatpush1.msra.mxu0 1.0
    %161 = vmatprep.subr.mxu0 0.0
    %162 = vmatpush1.msra.mxu0 1.0
    %163 = vmatprep.subr.mxu0 0.0
    %164 = vmatpush1.msra.mxu0 1.0
    %165 = vmatprep.subr.mxu0 0.0
    %166 = vmatpush1.msra.mxu0 1.0
    %167 = vmatprep.subr.mxu0 0.0
    %168 = vmatpush1.msra.mxu0 1.0
    %169 = vmatprep.subr.mxu0 0.0
    %170 = vmatpush1.msra.mxu0 1.0
    %171 = vmatprep.subr.mxu0 0.0
    %172 = vmatpush1.msra.mxu0 1.0
    %173 = vmatprep.subr.mxu0 0.0
    %174 = vmatpush1.msra.mxu0 1.0
    %175 = vmatprep.subr.mxu0 0.0
    %176 = vmatpush1.msra.mxu0 1.0
    %177 = vmatprep.subr.mxu0 0.0
    %178 = vmatpush1.msra.mxu0 1.0
    %179 = vmatprep.subr.mxu0 0.0
    %180 = vmatpush1.msra.mxu0 1.0
    %181 = vmatprep.subr.mxu0 0.0
    %182 = vmatpush1.msra.mxu0 1.0
    %183 = vmatprep.subr.mxu0 0.0
    %184 = vmatpush2.msra.mxu0 0.0
    %185 = vmatprep.subr.mxu0 0.0
    %186 = vmatpush2.msra.mxu0 0.0
    %187 = vmatprep.subr.mxu0 0.0
    %188 = vmatpush2.msra.mxu0 0.0
    %189 = vmatprep.subr.mxu0 0.0
    %190 = vmatpush2.msra.mxu0 0.0
    %191 = vmatprep.subr.mxu0 0.0
    %192 = vmatpush2.msra.mxu0 0.0
    %193 = vmatprep.subr.mxu0 0.0
    %194 = vmatpush2.msra.mxu0 0.0
    %195 = vmatprep.subr.mxu0 0.0
    %196 = vmatpush2.msra.mxu0 0.0
    %197 = vmatprep.subr.mxu0 0.0
    %198 = vmatpush2.msra.mxu0 0.0
    %199 = vmatprep.subr.mxu0 0.0
    %200 = vmatpush2.msra.mxu0 0.0
    %201 = vmatprep.subr.mxu0 0.0
    %202 = vmatpush2.msra.mxu0 0.0
    %203 = vmatprep.subr.mxu0 0.0
    %204 = vmatpush2.msra.mxu0 0.0
    %205 = vmatprep.subr.mxu0 0.0
    %206 = vmatpush2.msra.mxu0 0.0
    %207 = vmatprep.subr.mxu0 0.0
    %208 = vmatpush2.msra.mxu0 0.0
    %209 = vmatprep.subr.mxu0 0.0
    %210 = vmatpush2.msra.mxu0 0.0
    %211 = vmatprep.subr.mxu0 0.0
    %212 = vmatpush2.msra.mxu0 0.0
    %213 = vmatprep.subr.mxu0 0.0
    %214 = vmatpush2.msra.mxu0 0.0
    %215 = vmatprep.mubr.f32.mxu0 0.0
    %216 = vmatmul.mubr.f32.gmra.mxu0 %v132
    %v217 = vpop.f32.mrf.mxu0
    %v218 = vadd.f32 0.0, %v217
    %v219 = vpop.f32.mrf.mxu0
    %220 = vmatprep.mubr.f32.mxu0 0.0
    %221 = vmatmul.mubr.f32.gmra.mxu0 %v134
    %v222 = vpop.f32.mrf.mxu0
    %v223 = vadd.f32 0.0, %v222
    %v224 = vpop.f32.mrf.mxu0
    %225 = vmatprep.mubr.f32.mxu0 0.0
    %226 = vmatmul.mubr.f32.gmra.mxu0 %v136
    %v227 = vpop.f32.mrf.mxu0
    %v228 = vadd.f32 0.0, %v227
    %v229 = vpop.f32.mrf.mxu0
    %230 = vmatprep.mubr.f32.mxu0 0.0
    %231 = vmatmul.mubr.f32.gmra.mxu0 %v138
    %v232 = vpop.f32.mrf.mxu0
    %v233 = vadd.f32 0.0, %v232
    %v234 = vpop.f32.mrf.mxu0
    %235 = vdwg.mxu0
    %v236 = vlog2.pop %v218
    %v237 = vmul.f32 %v236, 0.6931472
    %v238 = vlog2.pop %v223
    %v239 = vmul.f32 %v238, 0.6931472
    %v240 = vlog2.pop %v228
    %v241 = vmul.f32 %v240, 0.6931472
    %v242 = vlog2.pop %v233
    %v243 = vmul.f32 %v242, 0.6931472
    %v244 = vadd.f32 %v126, %v237
    %v245 = vadd.f32 %v126, %v239
    %v246 = vadd.f32 %v126, %v241
    %v247 = vadd.f32 %v126, %v243
    %v248 = vmax.f32 %v110, %v111
    %v249 = vmax.f32 %v112, %v113
    %v250 = vmax.f32 %v248, %v249
    %251 = vmax.xlane.f32.xlu0 %v250
    %v252 = vpop.xlane.xlu0 %251
    %v253 = vrot.slane %v252, 4
    %v254 = vmax.f32 %v252, %v253
    %v255 = vrot.slane %v254, 2
    %v256 = vmax.f32 %v254, %v255
    %v257 = vrot.slane %v256, 1
    %v258 = vmax.f32 %v256, %v257
    %s259 = vtos %v258
    %v260 = vstv %s259
    %v261 = vsub.f32 %v110, %v260
    %v262 = vsub.f32 %v111, %v260
    %v263 = vsub.f32 %v112, %v260
    %v264 = vsub.f32 %v113, %v260
    %v265 = vmul.f32 %v261, 1.442695
    %v266 = vpow.pop %v265
    %v267 = vmul.f32 %v262, 1.442695
    %v268 = vpow.pop %v267
    %v269 = vmul.f32 %v263, 1.442695
    %v270 = vpow.pop %v269
    %v271 = vmul.f32 %v264, 1.442695
    %v272 = vpow.pop %v271
    %v273 = vadd.f32 %v266, %v268
    %v274 = vadd.f32 %v273, %v270
    %v275 = vadd.f32 %v274, %v272
    %v276 = vrot.slane %v275, 4
    %v277 = vadd.f32 %v275, %v276
    %v278 = vrot.slane %v277, 2
    %v279 = vadd.f32 %v277, %v278
    %v280 = vrot.slane %v279, 1
    %v281 = vadd.f32 %v279, %v280
    %v282 = vlog2.pop %v281
    %v283 = vmul.f32 %v282, 0.6931472
    %v284 = vadd.f32 %v260, %v283
    %285 = vmatprep.subr.mxu0 0.0
    %286 = vmatpush1.msra.mxu0 1.0
    %287 = vmatprep.subr.mxu0 0.0
    %288 = vmatpush1.msra.mxu0 1.0
    %289 = vmatprep.subr.mxu0 0.0
    %290 = vmatpush1.msra.mxu0 1.0
    %291 = vmatprep.subr.mxu0 0.0
    %292 = vmatpush1.msra.mxu0 1.0
    %293 = vmatprep.subr.mxu0 0.0
    %294 = vmatpush1.msra.mxu0 1.0
    %295 = vmatprep.subr.mxu0 0.0
    %296 = vmatpush1.msra.mxu0 1.0
    %297 = vmatprep.subr.mxu0 0.0
    %298 = vmatpush1.msra.mxu0 1.0
    %299 = vmatprep.subr.mxu0 0.0
    %300 = vmatpush1.msra.mxu0 1.0
    %301 = vmatprep.subr.mxu0 0.0
    %302 = vmatpush1.msra.mxu0 1.0
    %303 = vmatprep.subr.mxu0 0.0
    %304 = vmatpush1.msra.mxu0 1.0
    %305 = vmatprep.subr.mxu0 0.0
    %306 = vmatpush1.msra.mxu0 1.0
    %307 = vmatprep.subr.mxu0 0.0
    %308 = vmatpush1.msra.mxu0 1.0
    %309 = vmatprep.subr.mxu0 0.0
    %310 = vmatpush1.msra.mxu0 1.0
    %311 = vmatprep.subr.mxu0 0.0
    %312 = vmatpush1.msra.mxu0 1.0
    %313 = vmatprep.subr.mxu0 0.0
    %314 = vmatpush1.msra.mxu0 1.0
    %315 = vmatprep.subr.mxu0 0.0
    %316 = vmatpush1.msra.mxu0 1.0
    %317 = vmatprep.subr.mxu0 0.0
    %318 = vmatpush2.msra.mxu0 0.0
    %319 = vmatprep.subr.mxu0 0.0
    %320 = vmatpush2.msra.mxu0 0.0
    %321 = vmatprep.subr.mxu0 0.0
    %322 = vmatpush2.msra.mxu0 0.0
    %323 = vmatprep.subr.mxu0 0.0
    %324 = vmatpush2.msra.mxu0 0.0
    %325 = vmatprep.subr.mxu0 0.0
    %326 = vmatpush2.msra.mxu0 0.0
    %327 = vmatprep.subr.mxu0 0.0
    %328 = vmatpush2.msra.mxu0 0.0
    %329 = vmatprep.subr.mxu0 0.0
    %330 = vmatpush2.msra.mxu0 0.0
    %331 = vmatprep.subr.mxu0 0.0
    %332 = vmatpush2.msra.mxu0 0.0
    %333 = vmatprep.subr.mxu0 0.0
    %334 = vmatpush2.msra.mxu0 0.0
    %335 = vmatprep.subr.mxu0 0.0
    %336 = vmatpush2.msra.mxu0 0.0
    %337 = vmatprep.subr.mxu0 0.0
    %338 = vmatpush2.msra.mxu0 0.0
    %339 = vmatprep.subr.mxu0 0.0
    %340 = vmatpush2.msra.mxu0 0.0
    %341 = vmatprep.subr.mxu0 0.0
    %342 = vmatpush2.msra.mxu0 0.0
    %343 = vmatprep.subr.mxu0 0.0
    %344 = vmatpush2.msra.mxu0 0.0
    %345 = vmatprep.subr.mxu0 0.0
    %346 = vmatpush2.msra.mxu0 0.0
    %347 = vmatprep.subr.mxu0 0.0
    %348 = vmatpush2.msra.mxu0 0.0
    %349 = vmatprep.mubr.f32.mxu0 0.0
    %350 = vmatmul.mubr.f32.gmra.mxu0 %v266
    %v351 = vpop.f32.mrf.mxu0
    %v352 = vadd.f32 0.0, %v351
    %v353 = vpop.f32.mrf.mxu0
    %354 = vmatprep.mubr.f32.mxu0 0.0
    %355 = vmatmul.mubr.f32.gmra.mxu0 %v268
    %v356 = vpop.f32.mrf.mxu0
    %v357 = vadd.f32 0.0, %v356
    %v358 = vpop.f32.mrf.mxu0
    %359 = vmatprep.mubr.f32.mxu0 0.0
    %360 = vmatmul.mubr.f32.gmra.mxu0 %v270
    %v361 = vpop.f32.mrf.mxu0
    %v362 = vadd.f32 0.0, %v361
    %v363 = vpop.f32.mrf.mxu0
    %364 = vmatprep.mubr.f32.mxu0 0.0
    %365 = vmatmul.mubr.f32.gmra.mxu0 %v272
    %v366 = vpop.f32.mrf.mxu0
    %v367 = vadd.f32 0.0, %v366
    %v368 = vpop.f32.mrf.mxu0
    %369 = vdwg.mxu0
    %v370 = vlog2.pop %v352
    %v371 = vmul.f32 %v370, 0.6931472
    %v372 = vlog2.pop %v357
    %v373 = vmul.f32 %v372, 0.6931472
    %v374 = vlog2.pop %v362
    %v375 = vmul.f32 %v374, 0.6931472
    %v376 = vlog2.pop %v367
    %v377 = vmul.f32 %v376, 0.6931472
    %v378 = vadd.f32 %v260, %v371
    %v379 = vadd.f32 %v260, %v373
    %v380 = vadd.f32 %v260, %v375
    %v381 = vadd.f32 %v260, %v377
    %v382 = vld [vmem:[#allocation2] sm:$0x1]
    %v383 = vmax.f32 %v382, %v150
    %v384 = vsub.f32 %v382, %v150
    %vm385 = vcmp.ne.f32.partialorder %v384, %v384
    %v386 = vadd.f32 %v382, %v150
    %v387 = vand.u32 2147483647, %v384
    %v388 = vsub.f32 0.0, %v387
    %v389 = vmul.f32 %v388, 1.442695
    %v390 = vpow.pop %v389
    %v391 = vadd.f32 %v390, 1.0
    %v392 = vlog2.pop %v391
    %v393 = vmul.f32 %v392, 0.6931472
    %v394 = vmul.f32 -0.5, %v390
    %v395 = vadd.f32 %v394, 1.0
    %v396 = vmul.f32 %v395, %v390
    %v397 = vand.u32 2147483647, %v390
    %vm398 = vcmp.lt.f32.partialorder %v397, 0.0004427343
    %v399 = vsel %vm398, %v396, %v393
    %v400 = vadd.f32 %v383, %v399
    %v401 = vsel %vm385, %v386, %v400
    %402 = vst [vmem:[#allocation2] sm:$0x1] %v401
    %v403 = vld [vmem:[#allocation3] sm:$0x1]
    %v404 = vmax.f32 %v403, %v284
    %v405 = vsub.f32 %v403, %v284
    %vm406 = vcmp.ne.f32.partialorder %v405, %v405
    %v407 = vadd.f32 %v403, %v284
    %v408 = vand.u32 2147483647, %v405
    %v409 = vsub.f32 0.0, %v408
    %v410 = vmul.f32 %v409, 1.442695
    %v411 = vpow.pop %v410
    %v412 = vadd.f32 %v411, 1.0
    %v413 = vlog2.pop %v412
    %v414 = vmul.f32 %v413, 0.6931472
    %v415 = vmul.f32 -0.5, %v411
    %v416 = vadd.f32 %v415, 1.0
    %v417 = vmul.f32 %v416, %v411
    %v418 = vand.u32 2147483647, %v411
    %vm419 = vcmp.lt.f32.partialorder %v418, 0.0004427343
    %v420 = vsel %vm419, %v417, %v414
    %v421 = vadd.f32 %v404, %v420
    %v422 = vsel %vm406, %v407, %v421
    %423 = vst [vmem:[#allocation3] sm:$0x1] %v422
    %v424 = vld [vmem:[#allocation4] sm:$0x1]
    %v425 = vmax.f32 %v62, %v63
    %v426 = vmax.f32 %v64, %v65
    %v427 = vmax.f32 %v425, %v426
    %v428 = vrot.slane %v427, 4
    %v429 = vmax.f32 %v427, %v428
    %v430 = vrot.slane %v429, 2
    %v431 = vmax.f32 %v429, %v430
    %v432 = vrot.slane %v431, 1
    %v433 = vmax.f32 %v431, %v432
    %v434 = vmax.f32 %v424, %v433
    %435 = vst [vmem:[#allocation4] sm:$0x1] %v434
    %v436 = vmul.f32 %v244, 4.0
    %v437 = vmul.f32 %v245, 4.0
    %v438 = vmul.f32 %v246, 4.0
    %v439 = vmul.f32 %v247, 4.0
    %v440 = vadd.f32 %v378, %v436
    %v441 = vadd.f32 %v379, %v437
    %v442 = vadd.f32 %v380, %v438
    %v443 = vadd.f32 %v381, %v439
    %v444 = vmax.f32 %v440, 0.0
    %v445 = vmax.f32 %v441, 0.0
    %v446 = vmax.f32 %v442, 0.0
    %v447 = vmax.f32 %v443, 0.0
    %v448 = vsub.f32 0.0, %v440
    %v449 = vsub.f32 0.0, %v441
    %v450 = vsub.f32 0.0, %v442
    %v451 = vsub.f32 0.0, %v443
    %vm452 = vcmp.ne.f32.partialorder %v448, %v448
    %vm453 = vcmp.ne.f32.partialorder %v449, %v449
    %vm454 = vcmp.ne.f32.partialorder %v450, %v450
    %vm455 = vcmp.ne.f32.partialorder %v451, %v451
    %v456 = vadd.f32 %v440, 0.0
    %v457 = vadd.f32 %v441, 0.0
    %v458 = vadd.f32 %v442, 0.0
    %v459 = vadd.f32 %v443, 0.0
    %v460 = vand.u32 2147483647, %v448
    %v461 = vand.u32 2147483647, %v449
    %v462 = vand.u32 2147483647, %v450
    %v463 = vand.u32 2147483647, %v451
    %v464 = vsub.f32 0.0, %v460
    %v465 = vsub.f32 0.0, %v461
    %v466 = vsub.f32 0.0, %v462
    %v467 = vsub.f32 0.0, %v463
    %v468 = vmul.f32 %v464, 1.442695
    %v469 = vpow.pop %v468
    %v470 = vmul.f32 %v465, 1.442695
    %v471 = vpow.pop %v470
    %v472 = vmul.f32 %v466, 1.442695
    %v473 = vpow.pop %v472
    %v474 = vmul.f32 %v467, 1.442695
    %v475 = vpow.pop %v474
    %v476 = vadd.f32 %v469, 1.0
    %v477 = vlog2.pop %v476
    %v478 = vmul.f32 %v477, 0.6931472
    %v479 = vmul.f32 -0.5, %v469
    %v480 = vadd.f32 %v479, 1.0
    %v481 = vmul.f32 %v480, %v469
    %v482 = vand.u32 2147483647, %v469
    %vm483 = vcmp.lt.f32.partialorder %v482, 0.0004427343
    %v484 = vsel %vm483, %v481, %v478
    %v485 = vadd.f32 %v471, 1.0
    %v486 = vlog2.pop %v485
    %v487 = vmul.f32 %v486, 0.6931472
    %v488 = vmul.f32 -0.5, %v471
    %v489 = vadd.f32 %v488, 1.0
    %v490 = vmul.f32 %v489, %v471
    %v491 = vand.u32 2147483647, %v471
    %vm492 = vcmp.lt.f32.partialorder %v491, 0.0004427343
    %v493 = vsel %vm492, %v490, %v487
    %v494 = vadd.f32 %v473, 1.0
    %v495 = vlog2.pop %v494
    %v496 = vmul.f32 %v495, 0.6931472
    %v497 = vmul.f32 -0.5, %v473
    %v498 = vadd.f32 %v497, 1.0
    %v499 = vmul.f32 %v498, %v473
    %v500 = vand.u32 2147483647, %v473
    %vm501 = vcmp.lt.f32.partialorder %v500, 0.0004427343
    %v502 = vsel %vm501, %v499, %v496
    %v503 = vadd.f32 %v475, 1.0
    %v504 = vlog2.pop %v503
    %v505 = vmul.f32 %v504, 0.6931472
    %v506 = vmul.f32 -0.5, %v475
    %v507 = vadd.f32 %v506, 1.0
    %v508 = vmul.f32 %v507, %v475
    %v509 = vand.u32 2147483647, %v475
    %vm510 = vcmp.lt.f32.partialorder %v509, 0.0004427343
    %v511 = vsel %vm510, %v508, %v505
    %v512 = vadd.f32 %v444, %v484
    %v513 = vadd.f32 %v445, %v493
    %v514 = vadd.f32 %v446, %v502
    %v515 = vadd.f32 %v447, %v511
    %v516 = vsel %vm452, %v456, %v512
    %v517 = vsel %vm453, %v457, %v513
    %v518 = vsel %vm454, %v458, %v514
    %v519 = vsel %vm455, %v459, %v515
    %520 = vmatprep.subr.mxu0 0.0
    %521 = vmatpush1.msra.mxu0 1.0
    %522 = vmatprep.subr.mxu0 0.0
    %523 = vmatpush1.msra.mxu0 1.0
    %524 = vmatprep.subr.mxu0 0.0
    %525 = vmatpush1.msra.mxu0 1.0
    %526 = vmatprep.subr.mxu0 0.0
    %527 = vmatpush1.msra.mxu0 1.0
    %528 = vmatprep.subr.mxu0 0.0
    %529 = vmatpush1.msra.mxu0 1.0
    %530 = vmatprep.subr.mxu0 0.0
    %531 = vmatpush1.msra.mxu0 1.0
    %532 = vmatprep.subr.mxu0 0.0
    %533 = vmatpush1.msra.mxu0 1.0
    %534 = vmatprep.subr.mxu0 0.0
    %535 = vmatpush1.msra.mxu0 1.0
    %536 = vmatprep.subr.mxu0 0.0
    %537 = vmatpush1.msra.mxu0 1.0
    %538 = vmatprep.subr.mxu0 0.0
    %539 = vmatpush1.msra.mxu0 1.0
    %540 = vmatprep.subr.mxu0 0.0
    %541 = vmatpush1.msra.mxu0 1.0
    %542 = vmatprep.subr.mxu0 0.0
    %543 = vmatpush1.msra.mxu0 1.0
    %544 = vmatprep.subr.mxu0 0.0
    %545 = vmatpush1.msra.mxu0 1.0
    %546 = vmatprep.subr.mxu0 0.0
    %547 = vmatpush1.msra.mxu0 1.0
    %548 = vmatprep.subr.mxu0 0.0
    %549 = vmatpush1.msra.mxu0 1.0
    %550 = vmatprep.subr.mxu0 0.0
    %551 = vmatpush1.msra.mxu0 1.0
    %552 = vmatprep.subr.mxu0 0.0
    %553 = vmatpush2.msra.mxu0 0.0
    %554 = vmatprep.subr.mxu0 0.0
    %555 = vmatpush2.msra.mxu0 0.0
    %556 = vmatprep.subr.mxu0 0.0
    %557 = vmatpush2.msra.mxu0 0.0
    %558 = vmatprep.subr.mxu0 0.0
    %559 = vmatpush2.msra.mxu0 0.0
    %560 = vmatprep.subr.mxu0 0.0
    %561 = vmatpush2.msra.mxu0 0.0
    %562 = vmatprep.subr.mxu0 0.0
    %563 = vmatpush2.msra.mxu0 0.0
    %564 = vmatprep.subr.mxu0 0.0
    %565 = vmatpush2.msra.mxu0 0.0
    %566 = vmatprep.subr.mxu0 0.0
    %567 = vmatpush2.msra.mxu0 0.0
    %568 = vmatprep.subr.mxu0 0.0
    %569 = vmatpush2.msra.mxu0 0.0
    %570 = vmatprep.subr.mxu0 0.0
    %571 = vmatpush2.msra.mxu0 0.0
    %572 = vmatprep.subr.mxu0 0.0
    %573 = vmatpush2.msra.mxu0 0.0
    %574 = vmatprep.subr.mxu0 0.0
    %575 = vmatpush2.msra.mxu0 0.0
    %576 = vmatprep.subr.mxu0 0.0
    %577 = vmatpush2.msra.mxu0 0.0
    %578 = vmatprep.subr.mxu0 0.0
    %579 = vmatpush2.msra.mxu0 0.0
    %580 = vmatprep.subr.mxu0 0.0
    %581 = vmatpush2.msra.mxu0 0.0
    %582 = vmatprep.subr.mxu0 0.0
    %583 = vmatpush2.msra.mxu0 0.0
    %584 = vmatprep.mubr.f32.mxu0 0.0
    %585 = vmatmul.mubr.f32.gmra.mxu0 %v62
    %v586 = vpop.f32.mrf.mxu0
    %v587 = vadd.f32 0.0, %v586
    %v588 = vpop.f32.mrf.mxu0
    %589 = vmatprep.mubr.f32.mxu0 0.0
    %590 = vmatmul.mubr.f32.gmra.mxu0 %v63
    %v591 = vpop.f32.mrf.mxu0
    %v592 = vadd.f32 0.0, %v591
    %v593 = vpop.f32.mrf.mxu0
    %594 = vmatprep.mubr.f32.mxu0 0.0
    %595 = vmatmul.mubr.f32.gmra.mxu0 %v64
    %v596 = vpop.f32.mrf.mxu0
    %v597 = vadd.f32 0.0, %v596
    %v598 = vpop.f32.mrf.mxu0
    %599 = vmatprep.mubr.f32.mxu0 0.0
    %600 = vmatmul.mubr.f32.gmra.mxu0 %v65
    %v601 = vpop.f32.mrf.mxu0
    %v602 = vadd.f32 0.0, %v601
    %v603 = vpop.f32.mrf.mxu0
    %604 = vdwg.mxu0
    %vm605 = vcmp.gt.f32.partialorder %v587, 0.5
    %vm606 = vcmp.gt.f32.partialorder %v592, 0.5
    %vm607 = vcmp.gt.f32.partialorder %v597, 0.5
    %vm608 = vcmp.gt.f32.partialorder %v602, 0.5
    %v609 = vsel %vm605, 1, 0
    %v610 = vsel %vm606, 1, 0
    %v611 = vsel %vm607, 1, 0
    %v612 = vsel %vm608, 1, 0
    %v613 = vcvt.s32.f32 %v609
    %v614 = vcvt.s32.f32 %v610
    %v615 = vcvt.s32.f32 %v611
    %v616 = vcvt.s32.f32 %v612
    %s617 = sld [smem:[#allocation5]]
    %v618 = vmul.f32 %v516, %v613
    %v619 = vmul.f32 %v517, %v614
    %v620 = vmul.f32 %v518, %v615
    %v621 = vmul.f32 %v519, %v616
    %vm622 = vcmask 7168
    %v623 = vsel %vm622, %v618, 0.0
    %v624 = vsel %vm622, %v619, 0.0
    %v625 = vadd.f32 %v623, %v624
    %v626 = vsel %vm622, %v620, 0.0
    %v627 = vadd.f32 %v625, %v626
    %v628 = vsel %vm622, %v621, 0.0
    %v629 = vadd.f32 %v627, %v628
    %630 = vadd.xlane.f32.xlu0 %v629
    %v631 = vpop.xlane.xlu0 %630
    %v632 = vrot.slane %v631, 4
    %v633 = vadd.f32 %v631, %v632
    %v634 = vrot.slane %v633, 2
    %v635 = vadd.f32 %v633, %v634
    %v636 = vrot.slane %v635, 1
    %v637 = vadd.f32 %v635, %v636
    %s638 = vtos %v637
    %s639 = sadd.f32 %s617, %s638
    %s640 = scalar_lea.smem [#allocation5], 0
    %641 = sst [smem:[%s640]] %s639
    %s642 = sld [smem:[#allocation5 + $0x1]]
    %v643 = vsel %vm622, %v613, 0.0
    %v644 = vsel %vm622, %v614, 0.0
    %v645 = vadd.f32 %v643, %v644
    %v646 = vsel %vm622, %v615, 0.0
    %v647 = vadd.f32 %v645, %v646
    %v648 = vsel %vm622, %v616, 0.0
    %v649 = vadd.f32 %v647, %v648
    %650 = vadd.xlane.f32.xlu0 %v649
    %v651 = vpop.xlane.xlu0 %650
    %v652 = vrot.slane %v651, 4
    %v653 = vadd.f32 %v651, %v652
    %v654 = vrot.slane %v653, 2
    %v655 = vadd.f32 %v653, %v654
    %v656 = vrot.slane %v655, 1
    %v657 = vadd.f32 %v655, %v656
    %s658 = vtos %v657
    %s659 = sadd.f32 %s642, %s658
    %s660 = scalar_lea.smem [#allocation5], 1
    %661 = sst [smem:[%s660]] %s659
    // Predicated region
    $region22: #{tpu_custom_call.1} parent=1 // pred_check
      %p662 = pneg %p38
    $region23: #{tpu_custom_call.1} parent=1 // pred_check_branch
      %664 = sbr.rel (%p662) target = $region25
    $region24: #{tpu_custom_call.1} parent=1 // pred_region
      %v665 = vld [vmem:[#allocation3] sm:$0x1]
      %v666 = vld [vmem:[#allocation2] sm:$0x1]
      %v667 = vmul.f32 %v666, 4.0
      %v668 = vadd.f32 %v665, %v667
      %v669 = vmax.f32 %v668, 0.0
      %v670 = vsub.f32 0.0, %v668
      %vm671 = vcmp.ne.f32.partialorder %v670, %v670
      %v672 = vadd.f32 %v668, 0.0
      %v673 = vand.u32 2147483647, %v670
      %v674 = vsub.f32 0.0, %v673
      %v675 = vmul.f32 %v674, 1.442695
      %v676 = vpow.pop %v675
      %v677 = vadd.f32 %v676, 1.0
      %v678 = vlog2.pop %v677
      %v679 = vmul.f32 %v678, 0.6931472
      %v680 = vmul.f32 -0.5, %v676
      %v681 = vadd.f32 %v680, 1.0
      %v682 = vmul.f32 %v681, %v676
      %v683 = vand.u32 2147483647, %v676
      %vm684 = vcmp.lt.f32.partialorder %v683, 0.0004427343
      %v685 = vsel %vm684, %v682, %v679
      %v686 = vadd.f32 %v669, %v685
      %v687 = vsel %vm671, %v672, %v686
      %v688 = vld [vmem:[#allocation4] sm:$0x1]
      %v689 = vmul.f32 %v687, %v688
      %vm690 = vcmask 1040384
      %v691 = vsel %vm690, %v689, 0.0
      %692 = vadd.xlane.f32.xlu0 %v691
      %v693 = vpop.xlane.xlu0 %692
      %v694 = vrot.slane %v693, 4
      %v695 = vadd.f32 %v693, %v694
      %v696 = vrot.slane %v695, 2
      %v697 = vadd.f32 %v695, %v696
      %v698 = vrot.slane %v697, 1
      %v699 = vadd.f32 %v697, %v698
      %s700 = vtos %v699
      %v701 = vsel %vm690, %v688, 0.0
      %702 = vadd.xlane.f32.xlu0 %v701
      %v703 = vpop.xlane.xlu0 %702
      %v704 = vrot.slane %v703, 4
      %v705 = vadd.f32 %v703, %v704
      %v706 = vrot.slane %v705, 2
      %v707 = vadd.f32 %v705, %v706
      %v708 = vrot.slane %v707, 1
      %v709 = vadd.f32 %v707, %v708
      %s710 = vtos %v709
      %v711 = vstv %s710
      %v712 = vrcp.pop %v711
      %s713 = vtos %v712
      %s714 = smul.f32 %s700, %s713
      %s715 = sld [smem:[#allocation5]]
      %s716 = sld [smem:[#allocation5 + $0x1]]
      %v717 = vstv %s716
      %v718 = vrcp.pop %v717
      %s719 = vtos %v718
      %s720 = smul.f32 %s715, %s719
      %s721 = sadd.f32 %s714, %s720
      %s722 = scalar_lea.smem [#allocation11], 0
      %723 = sst [smem:[%s722]] %s721
    $region25: #{tpu_custom_call.1} parent=1 // pred_fallthru
      _
    // Predicated region
    $region26: #{tpu_custom_call.1} parent=1 // pred_check
      _
    $region27: #{tpu_custom_call.1} parent=1 // pred_check_branch
      %725 = sbr.rel (0) target = $region29
    $region28: #{tpu_custom_call.1} parent=1 // pred_region
      %s727 = ssub.s32 16, 16
      %728 = vsyncadd [#allocation8], %s727
      %731 = dma.smem_to_hbm [#allocation11], 16, %s2, [#allocation8]
    $region29: #{tpu_custom_call.1} parent=1 // pred_fallthru
      _
    // Predicated region
    $region30: #{tpu_custom_call.1} parent=1 // pred_check
      _
    $region31: #{tpu_custom_call.1} parent=1 // pred_check_branch
      %733 = sbr.rel (0) target = $region33
    $region32: #{tpu_custom_call.1} parent=1 // pred_region
      %734 = dma.done [#allocation8], 16
    $region33: #{tpu_custom_call.1} parent=1 // pred_fallthru
      _
    %735 = sfence
    %736 = vsyncpa [#allocation7], 1
    %737 = vsyncpa [#allocation10], 1
    %738 = vsyncpa [#allocation8], 1

</llo_original>
